<compile_context>
chip_gen: v5e
topology: v5e:2x2
jax: 0.10.0
libtpu: 0.0.40
codegen_flags: <defaults>
</compile_context>

<pallas_src>
import jax
import jax.numpy as jnp
from jax.experimental import pallas as pl
from jax.experimental.pallas import tpu as pltpu

_LANES = 128
_SUBLANES = 8


def _device_kind():
    try:
        return jax.devices()[0].device_kind.lower().replace(" ", "")
    except Exception:
        return ""


def _tensorcores_per_chip(kind):
    """Perf-only heuristic: how many TensorCores the outer 'parallel' grid axis
    can shard over.  Correctness never depends on this value."""
    if not kind or "lite" in kind:
        return 1
    if "v5e" in kind or "v6" in kind:
        return 1
    if "v4" in kind or "v5p" in kind or "v5" in kind or "v7" in kind or "7x" in kind:
        return 2
    return 1


def _make_l1_kernel(tile_rows, acc_rows, blocks_per_core, valid_rows,
                    first_masked_block, needs_mask, low_precision_diff):
    """Builds the sum-of-|a-b| kernel for a fixed (static) tiling."""
    n_chunks = tile_rows // acc_rows

    def kernel(a_ref, b_ref, out_ref):
        c = pl.program_id(0)
        j = pl.program_id(1)

        @pl.when(j == 0)
        def _init():
            out_ref[...] = jnp.zeros_like(out_ref)

        a = a_ref[...]
        b = b_ref[...]
        if low_precision_diff:
            # bf16 sub/abs on packed vregs; a single upcast feeds the f32
            # accumulator (tiny precision hit in the difference only).
            absd = jnp.abs(a - b).astype(jnp.float32)
        else:
            absd = jnp.abs(a.astype(jnp.float32) - b.astype(jnp.float32))

        def _accumulate(vals):
            # (tile_rows, 128) -> (n_chunks, acc_rows, 128); summing the leading
            # axis is independent elementwise vreg adds (pure VPU, no XLU), and
            # acc_rows/8 independent accumulator vregs keep the VALU slots fed.
            partial = vals.reshape(n_chunks, acc_rows, _LANES).sum(axis=0)
            out_ref[...] += partial.reshape(1, acc_rows, _LANES)

        if needs_mask:
            blk = c * blocks_per_core + j

            # Interior blocks: unmasked accumulate (no per-element iota/where).
            @pl.when(blk < first_masked_block)
            def _interior():
                _accumulate(absd)

            # Final partial block and any clamped (logically OOB) blocks:
            # zero rows past the true row count BEFORE reducing.
            @pl.when(blk >= first_masked_block)
            def _edge():
                row0 = blk * tile_rows
                row_ids = row0 + jax.lax.broadcasted_iota(
                    jnp.int32, absd.shape, 0)
                _accumulate(jnp.where(row_ids < valid_rows, absd, 0.0))
        else:
            _accumulate(absd)

    return kernel


def l1_loss(outputs, imgs, *, tile_rows=8192):
    assert outputs.shape == imgs.shape, (
        "resize branch not implemented; shapes must match")
    n_elems = outputs.size

    result_dtype = jnp.result_type(outputs.dtype, imgs.dtype)
    if not jnp.issubdtype(result_dtype, jnp.floating):
        result_dtype = jnp.float32

    a_flat = outputs.reshape(-1)
    b_flat = imgs.reshape(-1)

    rows = n_elems // _LANES
    if rows < _SUBLANES:
        # Tiny input: not worth a kernel launch; compute directly.
        d = a_flat.astype(jnp.float32) - b_flat.astype(jnp.float32)
        return (jnp.sum(jnp.abs(d)) / n_elems).astype(result_dtype)

    main = rows * _LANES
    tail_sum = None
    if main != n_elems:
        # Ragged tail (< 128 elems): handled in glue (negligible).
        ta = a_flat[main:].astype(jnp.float32)
        tb = b_flat[main:].astype(jnp.float32)
        tail_sum = jnp.sum(jnp.abs(ta - tb))
    a2 = a_flat[:main].reshape(rows, _LANES)   # free reshape, no copy
    b2 = b_flat[:main].reshape(rows, _LANES)

    itemsize = jnp.dtype(a2.dtype).itemsize

    # Tile sizing: multiple of 8 sublanes, never larger than the data, and
    # capped so (2 inputs x 2 pipeline buffers) stays well under ~40 MiB VMEM
    # (safe on v7x's 64 MiB/TC as well as v5e/v6e).
    max_tile_rows = max(
        _SUBLANES,
        ((40 << 20) // (4 * _LANES * itemsize) // _SUBLANES) * _SUBLANES)
    tile_rows = max(_SUBLANES, (tile_rows // _SUBLANES) * _SUBLANES)
    tile_rows = min(tile_rows, (rows // _SUBLANES) * _SUBLANES, max_tile_rows)

    # Widest accumulator (in sublane rows) that divides the tile.
    acc_rows = _SUBLANES
    for cand in (64, 32, 16):
        if tile_rows % cand == 0:
            acc_rows = cand
            break

    num_blocks = pl.cdiv(rows, tile_rows)

    # Shard the streaming reduction across TensorCores only on multi-TC parts
    # (v4 / v5p / v7x); single-TC v5e / v6e keep a trivial 1-wide core axis so
    # no padded/clamped blocks or extra writebacks are introduced.
    kind = _device_kind()
    num_cores = max(1, min(_tensorcores_per_chip(kind), num_blocks))
    blocks_per_core = pl.cdiv(num_blocks, num_cores)
    padded_blocks = num_cores * blocks_per_core

    ragged_last = (num_blocks * tile_rows != rows)
    needs_mask = ragged_last or (padded_blocks != num_blocks)
    # First logical block index that must be masked: the partial last block if
    # any, otherwise only the clamped (>= num_blocks) duplicates.
    first_masked_block = (num_blocks - 1) if ragged_last else num_blocks

    if padded_blocks == num_blocks:
        idx_map = lambda c, j: (c * blocks_per_core + j, 0)
    else:
        # Clamp logically-OOB block indices to the last valid block; their
        # contribution is zeroed by the in-kernel row mask.
        idx_map = lambda c, j: (
            jnp.minimum(c * blocks_per_core + j, num_blocks - 1), 0)

    # bf16 sub/abs only where the VPU supports bf16 (v6e / v7x).
    low_precision_diff = (
        a2.dtype == jnp.bfloat16 and b2.dtype == jnp.bfloat16
        and ("v6" in kind or "v7" in kind or "7x" in kind))

    kernel = _make_l1_kernel(tile_rows, acc_rows, blocks_per_core, rows,
                             first_masked_block, needs_mask,
                             low_precision_diff)

    # Scoped VMEM: 2 inputs x 2 buffers x tile + partials, with slack; capped
    # at 48 MiB so it never exceeds v7x physical VMEM.
    block_bytes = tile_rows * _LANES * itemsize
    vmem_needed = (4 * block_bytes
                   + 2 * num_cores * acc_rows * _LANES * 4
                   + (4 << 20))
    vmem_limit = int(min(max(vmem_needed, 32 << 20), 48 << 20))

    partials = pl.pallas_call(
        kernel,
        out_shape=jax.ShapeDtypeStruct((num_cores, acc_rows, _LANES),
                                       jnp.float32),
        grid=(num_cores, blocks_per_core),
        in_specs=[
            pl.BlockSpec((tile_rows, _LANES), idx_map),
            pl.BlockSpec((tile_rows, _LANES), idx_map),
        ],
        out_specs=pl.BlockSpec((1, acc_rows, _LANES), lambda c, j: (c, 0, 0)),
        compiler_params=pltpu.CompilerParams(
            dimension_semantics=("parallel", "arbitrary"),
            vmem_limit_bytes=vmem_limit),
    )(a2, b2)

    total = jnp.sum(partials)
    if tail_sum is not None:
        total = total + tail_sum
    # Divide by the true element count in glue (python int -> no overflow),
    # then cast to the inputs' promoted dtype for PyTorch parity.
    return (total / n_elems).astype(result_dtype)


if __name__ == "__main__":
    key = jax.random.PRNGKey(0)
    k1, k2 = jax.random.split(key)
    # NCHW inputs, same shape for outputs and imgs
    outputs = jax.random.normal(k1, (2, 4, 16, 16), dtype=jnp.float32)
    imgs = jax.random.normal(k2, (2, 4, 16, 16), dtype=jnp.float32)

    loss = l1_loss(outputs, imgs)
    jax.block_until_ready(loss)

    # sanity check against plain-JAX reference
    ref = jnp.mean(jnp.abs(outputs - imgs))
    assert jnp.allclose(loss, ref, rtol=1e-6, atol=1e-6), (loss, ref)
    print("KERNEL_OK")
</pallas_src>

<mosaic_0001>
module attributes {stable_mosaic.version = 11 : i64} {
  func.func @kernel(%arg0: i32, %arg1: i32, %arg2: memref<16x128xf32, #tpu.memory_space<vmem>>, %arg3: memref<16x128xf32, #tpu.memory_space<vmem>>, %arg4: memref<1x16x128xf32, #tpu.memory_space<vmem>>) attributes {dimension_semantics = [#tpu.dimension_semantics<parallel>, #tpu.dimension_semantics<arbitrary>], iteration_bounds = array<i64: 1, 1>, scalar_prefetch = 0 : i64, scratch_operands = 0 : i64, tpu.core_type = #tpu.core_type<tc>, window_params = [{transform_indices = @transform_0, window_bounds = array<i64: 16, 128>}, {transform_indices = @transform_1, window_bounds = array<i64: 16, 128>}, {transform_indices = @transform_2, window_bounds = array<i64: 1, 16, 128>}]} {
    %c0_i32 = arith.constant 0 : i32
    %0 = arith.cmpi eq, %arg1, %c0_i32 : i32
    %1 = arith.extui %0 : i1 to i32
    %c0_i32_0 = arith.constant 0 : i32
    %2 = arith.cmpi ne, %1, %c0_i32_0 : i32
    scf.if %2 {
      %cst_10 = arith.constant 0.000000e+00 : f32
      %13 = vector.broadcast %cst_10 : f32 to vector<1x16x128xf32>
      %c0_11 = arith.constant 0 : index
      %c0_12 = arith.constant 0 : index
      %c0_13 = arith.constant 0 : index
      %14 = vector.load %arg4[%c0_11, %c0_12, %c0_13] : memref<1x16x128xf32, #tpu.memory_space<vmem>>, vector<1x16x128xf32>
      tpu.vector_store %arg4[%c0_11, %c0_12, %c0_13], %13 {strides = array<i32>} : memref<1x16x128xf32, #tpu.memory_space<vmem>>, vector<1x16x128xf32>,
    } else {
    }
    %c0 = arith.constant 0 : index
    %c0_1 = arith.constant 0 : index
    %3 = vector.load %arg2[%c0, %c0_1] : memref<16x128xf32, #tpu.memory_space<vmem>>, vector<16x128xf32>
    %c0_2 = arith.constant 0 : index
    %c0_3 = arith.constant 0 : index
    %4 = vector.load %arg3[%c0_2, %c0_3] : memref<16x128xf32, #tpu.memory_space<vmem>>, vector<16x128xf32>
    %5 = arith.subf %3, %4 : vector<16x128xf32>
    %6 = math.absf %5 : vector<16x128xf32>
    %7 = vector.shape_cast %6 : vector<16x128xf32> to vector<1x16x128xf32>
    %cst = arith.constant dense<0.000000e+00> : vector<16x128xf32>
    %8 = vector.multi_reduction <add>, %7, %cst [0] : vector<1x16x128xf32> to vector<16x128xf32>
    %c0_4 = arith.constant 0 : index
    %c0_5 = arith.constant 0 : index
    %c0_6 = arith.constant 0 : index
    %9 = vector.load %arg4[%c0_4, %c0_5, %c0_6] : memref<1x16x128xf32, #tpu.memory_space<vmem>>, vector<1x16x128xf32>
    %10 = vector.shape_cast %8 : vector<16x128xf32> to vector<1x16x128xf32>
    %11 = arith.addf %9, %10 : vector<1x16x128xf32>
    %c0_7 = arith.constant 0 : index
    %c0_8 = arith.constant 0 : index
    %c0_9 = arith.constant 0 : index
    %12 = vector.load %arg4[%c0_7, %c0_8, %c0_9] : memref<1x16x128xf32, #tpu.memory_space<vmem>>, vector<1x16x128xf32>
    tpu.vector_store %arg4[%c0_7, %c0_8, %c0_9], %11 {strides = array<i32>} : memref<1x16x128xf32, #tpu.memory_space<vmem>>, vector<1x16x128xf32>,
    return
  }
  func.func @transform_0(%arg0: i32, %arg1: i32) -> (i32, i32) {
    %c1_i32 = arith.constant 1 : i32
    %0 = arith.muli %arg0, %c1_i32 : i32
    %1 = arith.addi %0, %arg1 : i32
    %c0_i32 = arith.constant 0 : i32
    %c0_i32_0 = arith.constant 0 : i32
    return %1, %c0_i32 : i32, i32
  }
  func.func @transform_1(%arg0: i32, %arg1: i32) -> (i32, i32) {
    %c1_i32 = arith.constant 1 : i32
    %0 = arith.muli %arg0, %c1_i32 : i32
    %1 = arith.addi %0, %arg1 : i32
    %c0_i32 = arith.constant 0 : i32
    %c0_i32_0 = arith.constant 0 : i32
    return %1, %c0_i32 : i32, i32
  }
  func.func @transform_2(%arg0: i32, %arg1: i32) -> (i32, i32, i32) {
    %c0_i32 = arith.constant 0 : i32
    %c0_i32_0 = arith.constant 0 : i32
    %c0_i32_1 = arith.constant 0 : i32
    return %arg0, %c0_i32, %c0_i32_0 : i32, i32, i32
  }
}

</mosaic_0001>

<llo_original>
// kernel: tpu_custom_call.1
$region0: #{tpu_custom_call.1}
  #allocation0 [shape = 'u32[]', space=smem, size = 0x4, offset = 0x4, fixed_abs, tag = 'smem constant byte address 0x4 - core index']
  #allocation1 [shape = 'u32[72,128]{1,0:T(1,128)}', space=vmem, size = 0x9000, scoped, tag = 'internal scratch']
  %s0 = inlined_call_operand.hbm [shape: f32[16,128], index: 0, kind: input, shape index: {}]
  %s1 = inlined_call_operand.hbm [shape: f32[16,128], index: 1, kind: input, shape index: {}]
  %s2 = inlined_call_operand.hbm [shape: f32[1,16,128], index: 2, kind: output, shape index: {}]
  %s3 = sld [smem:[#allocation0]]
  $region30: #{tpu_custom_call.1} parent=0
    _
  %s5 = ssub.s32 1, %s3
  %s6 = scalar_select 0, %s5, %s3
  $region1: #{tpu_custom_call.1} parent=0
    #allocation2 [shape = 'u8[8192]{0}', space=vmem, size = 0x2000, scoped, tag = 'input window, operand 0, single buffered']
    #allocation3 [shape = 's32[1]{0}', space=sflag, size = 0x4, scoped, tag = 'scoped memory for tpu_custom_call.1']
    #allocation4 [shape = 's32[1]{0}', space=sflag, size = 0x4, scoped, tag = 'scoped memory for tpu_custom_call.1']
    #allocation5 [shape = 'u8[8192]{0}', space=vmem, size = 0x2000, scoped, tag = 'input window, operand 1, single buffered']
    #allocation6 [shape = 's32[1]{0}', space=sflag, size = 0x4, scoped, tag = 'scoped memory for tpu_custom_call.1']
    #allocation7 [shape = 'u8[8192]{0}', space=vmem, size = 0x2000, scoped, tag = 'output window, operand 0, single buffered']
    %7 = vsyncpa [#allocation3], 0
    %8 = vsyncpa [#allocation6], 0
    %9 = vsyncpa [#allocation4], 0
    // Predicated region
    $region2: #{tpu_custom_call.1} parent=1 // pred_check
      _
    $region3: #{tpu_custom_call.1} parent=1 // pred_check_branch
      %11 = sbr.rel (0) target = $region5
    $region4: #{tpu_custom_call.1} parent=1 // pred_region
      %s12 = sadd.s32 0, 0
      %s13 = smul.u32 2, %s12
      %15 = vsyncadd [#allocation3], 0
      %s16 = smul.addr %s13, 8
      %s17 = scalar_lea.hbm %s0, %s16
      %s18 = sshll.u32 %s17, 4
      %s19 = int_to_ptr.hbm [resolvable:$true] %s18
      %s20 = sshll.u32 [#allocation2], 4
      %s21 = int_to_ptr.vmem [resolvable:$true] %s20
      %26 = dma.hbm_to_vmem [thread:$0]  %s19, 256, %s21, [#allocation3], 128, 128, 8
    $region5: #{tpu_custom_call.1} parent=1 // pred_fallthru
      _
    // Predicated region
    $region6: #{tpu_custom_call.1} parent=1 // pred_check
      _
    $region7: #{tpu_custom_call.1} parent=1 // pred_check_branch
      %28 = sbr.rel (0) target = $region9
    $region8: #{tpu_custom_call.1} parent=1 // pred_region
      %s29 = sadd.s32 0, 0
      %s30 = smul.u32 2, %s29
      %32 = vsyncadd [#allocation6], 0
      %s33 = smul.addr %s30, 8
      %s34 = scalar_lea.hbm %s1, %s33
      %s35 = sshll.u32 %s34, 4
      %s36 = int_to_ptr.hbm [resolvable:$true] %s35
      %s37 = sshll.u32 [#allocation5], 4
      %s38 = int_to_ptr.vmem [resolvable:$true] %s37
      %43 = dma.hbm_to_vmem [thread:$0]  %s36, 256, %s38, [#allocation6], 128, 128, 8
    $region9: #{tpu_custom_call.1} parent=1 // pred_fallthru
      _
    // Predicated region
    $region10: #{tpu_custom_call.1} parent=1 // pred_check
      _
    $region11: #{tpu_custom_call.1} parent=1 // pred_check_branch
      %45 = sbr.rel (0) target = $region13
    $region12: #{tpu_custom_call.1} parent=1 // pred_region
      %47 = dma.done [#allocation3], 256
    $region13: #{tpu_custom_call.1} parent=1 // pred_fallthru
      _
    // Predicated region
    $region14: #{tpu_custom_call.1} parent=1 // pred_check
      _
    $region15: #{tpu_custom_call.1} parent=1 // pred_check_branch
      %49 = sbr.rel (0) target = $region17
    $region16: #{tpu_custom_call.1} parent=1 // pred_region
      %51 = dma.done [#allocation6], 256
    $region17: #{tpu_custom_call.1} parent=1 // pred_fallthru
      _
    %s52 = sadd.s32 0, 0
    %s53 = smul.u32 2, %s52
    %s54 = sadd.s32 0, 0
    %s55 = smul.u32 2, %s54
    %p56 = scmp.eq.s32.totalorder 0, 0
    // Predicated region
    $region18: #{tpu_custom_call.1} parent=1 // pred_check
      %p57 = pneg %p56
    $region19: #{tpu_custom_call.1} parent=1 // pred_check_branch
      %59 = sbr.rel (%p57) target = $region21
    $region20: #{tpu_custom_call.1} parent=1 // pred_region
      %60 = vst [vmem:[#allocation7] sm:$0xff] 0.0
      %61 = vst [vmem:[#allocation7 + $0x8] sm:$0xff] 0.0
    $region21: #{tpu_custom_call.1} parent=1 // pred_fallthru
      _
    %v62 = vld [vmem:[#allocation2] sm:$0xff]
    %v63 = vld [vmem:[#allocation2 + $0x8] sm:$0xff]
    %v64 = vld [vmem:[#allocation5] sm:$0xff]
    %v65 = vld [vmem:[#allocation5 + $0x8] sm:$0xff]
    %v66 = vsub.f32 %v62, %v64
    %v67 = vsub.f32 %v63, %v65
    %v68 = vand.u32 2147483647, %v66
    %v69 = vand.u32 2147483647, %v67
    %v70 = vadd.f32 %v68, 0.0
    %v71 = vadd.f32 %v69, 0.0
    %v72 = vld [vmem:[#allocation7] sm:$0xff]
    %v73 = vld [vmem:[#allocation7 + $0x8] sm:$0xff]
    %v74 = vadd.f32 %v72, %v70
    %v75 = vadd.f32 %v73, %v71
    %76 = vst [vmem:[#allocation7] sm:$0xff] %v74
    %77 = vst [vmem:[#allocation7 + $0x8] sm:$0xff] %v75
    // Predicated region
    $region22: #{tpu_custom_call.1} parent=1 // pred_check
      _
    $region23: #{tpu_custom_call.1} parent=1 // pred_check_branch
      %79 = sbr.rel (0) target = $region25
    $region24: #{tpu_custom_call.1} parent=1 // pred_region
      %81 = vsyncadd [#allocation4], 0
      %s82 = sshll.u32 [#allocation7], 4
      %s83 = int_to_ptr.vmem [resolvable:$true] %s82
      %s84 = sshll.u32 %s2, 4
      %s85 = int_to_ptr.hbm [resolvable:$true] %s84
      %90 = dma.vmem_to_hbm [thread:$0]  %s83, 256, %s85, [#allocation4], 128, 128, 8
    $region25: #{tpu_custom_call.1} parent=1 // pred_fallthru
      _
    // Predicated region
    $region26: #{tpu_custom_call.1} parent=1 // pred_check
      _
    $region27: #{tpu_custom_call.1} parent=1 // pred_check_branch
      %92 = sbr.rel (0) target = $region29
    $region28: #{tpu_custom_call.1} parent=1 // pred_region
      %94 = dma.done [#allocation4], 256
    $region29: #{tpu_custom_call.1} parent=1 // pred_fallthru
      _
    %95 = vsyncpa [#allocation3], 1
    %96 = vsyncpa [#allocation6], 1
    %97 = vsyncpa [#allocation4], 1

</llo_original>
